<compile_context>
chip_gen: v6e
topology: v6e:2x2x1
jax: 0.10.0
libtpu: 0.0.40
codegen_flags: <defaults>
</compile_context>

<pallas_src>
import jax
import jax.numpy as jnp
from jax import lax
from jax.experimental import pallas as pl
from jax.experimental.pallas import tpu as pltpu

_INV_SQRT2 = 0.7071067811865476  # 1/sqrt(2): exact (erf) GELU, same as nn.GELU()


def _round_up(x: int, m: int) -> int:
    return ((x + m - 1) // m) * m


# ------------------------------- Pallas kernel --------------------------------
def _conv3x3_gelu_kernel(a_ref, w_ref, o_ref):
    # a_ref: (TM, K_pad)     bf16  rows = output pixels' kh-folded receptive slabs
    # w_ref: (K_pad, N_pad)  bf16  kh-folded banded conv weights (VMEM resident)
    # o_ref: (TM, N_pad)     f32   lane-dense output tile
    acc = jnp.dot(a_ref[...], w_ref[...], preferred_element_type=jnp.float32)
    o_ref[...] = (0.5 * acc * (1.0 + lax.erf(acc * _INV_SQRT2))).astype(o_ref.dtype)


# ---------------------------- host-side weight prep ----------------------------
def prepare_conv_gelu_weights(w_oihw, width, dtype=jnp.bfloat16):
    """Fold the kw taps, the cin->cout contraction AND the three kh taps of a 3x3
    conv into one banded matrix [K_pad, N_pad] with
        K = 3*(W+2)*Cin   (kh-major, then padded column p, then cin)
        N = W*Cout        (output column-major, then cout)
    zero-padded up to lane multiples.  Input-independent: build once per layer."""
    cout, cin, kh, kw = (int(s) for s in w_oihw.shape)
    assert (kh, kw) == (3, 3), "ConvGelu uses a 3x3 kernel"
    k = 3 * (width + 2) * cin
    n = width * cout
    k_pad, n_pad = _round_up(k, 128), _round_up(n, 128)

    w_k = jnp.transpose(w_oihw.astype(jnp.float32), (2, 3, 1, 0))   # (kh, kw, cin, cout)
    p = jnp.arange(width + 2)[None, :, None]                        # padded input column
    wc = jnp.arange(width)[None, None, :]                           # output column
    q = jnp.arange(3)[:, None, None]                                # kw tap
    sel = (p == wc + q).astype(jnp.float32)                         # (kw, W+2, W)
    wb = jnp.einsum("qpw,kqio->kpiwo", sel, w_k)                    # (kh, W+2, cin, W, cout)
    wb = wb.reshape(k, n)
    wb = jnp.pad(wb, ((0, k_pad - k), (0, n_pad - n)))
    return wb.astype(dtype)


# --------------------------------- tiling --------------------------------------
def _choose_tile_m(m_total: int, target: int = 256) -> int:
    """Rows of the A slab per grid step.  Big tiles amortize the ~0.35us per-step
    overhead and fill the MXU's M dimension; keep >= 2 grid steps whenever there
    are >= 32 rows so both of v7x's TensorCores get work."""
    if m_total >= 2 * target:
        return target
    if m_total >= 32:
        return max(16, _round_up((m_total + 1) // 2, 16))
    return m_total                       # tiny problem: one full-extent block


def _run_conv_gelu(a, wb, tm, out_dtype, weight_buffer_count):
    m_pad, k_pad = (int(s) for s in a.shape)
    n_pad = int(wb.shape[1])
    w_kwargs = {}
    if weight_buffer_count is not None:
        # Constant index_map -> double-buffering the resident weight only wastes VMEM.
        w_kwargs["pipeline_mode"] = pl.Buffered(weight_buffer_count)
    return pl.pallas_call(
        _conv3x3_gelu_kernel,
        out_shape=jax.ShapeDtypeStruct((m_pad, n_pad), out_dtype),
        grid=(m_pad // tm,),
        in_specs=[
            pl.BlockSpec((tm, k_pad), lambda i: (i, 0)),
            pl.BlockSpec((k_pad, n_pad), lambda i: (0, 0), **w_kwargs),
        ],
        out_specs=pl.BlockSpec((tm, n_pad), lambda i: (i, 0)),
        compiler_params=pltpu.CompilerParams(
            dimension_semantics=("parallel",),
            # Blocks are small; keep the limit conservative for v7x's 64 MiB VMEM.
            vmem_limit_bytes=32 * 1024 * 1024,
        ),
    )(a, wb)


# ------------------------------ forward wrappers -------------------------------
def conv_gelu_nhwc(x_nhwc, wb, cout, out_dtype=jnp.float32):
    """ConvGelu on NHWC activations with pre-built banded weights `wb`
    (see prepare_conv_gelu_weights).  Returns NHWC [B, H, W, Cout]."""
    b, h, w, cin = (int(s) for s in x_nhwc.shape)
    k = 3 * (w + 2) * cin
    n = w * cout
    k_pad, n_pad = (int(s) for s in wb.shape)
    assert k_pad >= k and n_pad >= n

    # Padded NHWC rows, lanes = (W+2)*Cin, operands in MXU-native bf16.
    xp = jnp.pad(x_nhwc.astype(wb.dtype), ((0, 0), (1, 1), (1, 1), (0, 0)))
    rows = xp.reshape(b, h + 2, (w + 2) * cin)

    # Fold the three kh taps into the contraction axis (and the K lane-pad into
    # the same concatenate): A[b*H + r, :] = [rows[b,r], rows[b,r+1], rows[b,r+2], 0...].
    parts = [rows[:, 0:h], rows[:, 1:h + 1], rows[:, 2:h + 2]]
    if k_pad > k:
        parts.append(jnp.zeros((b, h, k_pad - k), wb.dtype))
    a = jnp.concatenate(parts, axis=-1).reshape(b * h, k_pad)

    m_total = b * h
    tm = _choose_tile_m(m_total)
    m_pad = _round_up(m_total, tm)
    if m_pad > m_total:
        a = jnp.pad(a, ((0, m_pad - m_total), (0, 0)))

    try:
        out = _run_conv_gelu(a, wb, tm, out_dtype, weight_buffer_count=1)
    except Exception:
        # Fallback for JAX versions without BlockSpec(pipeline_mode=pl.Buffered(1)).
        out = _run_conv_gelu(a, wb, tm, out_dtype, weight_buffer_count=None)

    return out[:m_total, :n].reshape(b, h, w, cout)


def conv_gelu_forward(x_nchw, w_oihw):
    """Drop-in equivalent of the PyTorch ConvGelu module: NCHW in, NCHW out.
    For chained layers prefer conv_gelu_nhwc + prepare_conv_gelu_weights (keeps
    activations NHWC end-to-end and hoists the input-independent weight prep)."""
    cout = int(w_oihw.shape[0])
    width = int(x_nchw.shape[3])
    wb = prepare_conv_gelu_weights(w_oihw, width)
    y = conv_gelu_nhwc(jnp.transpose(x_nchw, (0, 2, 3, 1)), wb, cout)
    return jnp.transpose(y, (0, 3, 1, 2))


# ------------------------------- reference (XLA) -------------------------------
def _ref_forward(x_nchw, w_oihw):
    gelu = lambda v: 0.5 * v * (1.0 + lax.erf(v * _INV_SQRT2))
    dn = lax.conv_dimension_numbers(x_nchw.shape, w_oihw.shape, ("NCHW", "OIHW", "NCHW"))
    y = lax.conv_general_dilated(x_nchw, w_oihw, (1, 1), ((1, 1), (1, 1)),
                                 dimension_numbers=dn)
    return gelu(y)


# ------------------------------------ main -------------------------------------
if __name__ == "__main__":
    # ConvGelu(i=4, o=8) on [B=2, 4, 16, 16] -> [2, 8, 16, 16].
    # (W*Cout = 128 -> lane-dense output; K = 3*(W+2)*Cin = 216 -> padded to 256.)
    B, CI, CO, H, W = 2, 4, 8, 16, 16

    key = jax.random.PRNGKey(0)
    kx, kw = jax.random.split(key)
    x = jax.random.normal(kx, (B, CI, H, W), dtype=jnp.float32)
    wt = jax.random.normal(kw, (CO, CI, 3, 3), dtype=jnp.float32) * 0.1  # Conv2d [O, I, kH, kW]

    # Input-independent weight prep hoisted out of the per-call path; activations
    # stay NHWC around the kernel (only the demo converts back to NCHW to compare
    # against the PyTorch-layout reference).
    wb = prepare_conv_gelu_weights(wt, W)
    x_nhwc = jnp.transpose(x, (0, 2, 3, 1))
    y_nhwc = conv_gelu_nhwc(x_nhwc, wb, CO)
    out = jax.block_until_ready(jnp.transpose(y_nhwc, (0, 3, 1, 2)))

    ref = _ref_forward(x, wt)
    assert out.shape == (B, CO, H, W), out.shape
    # bf16 MXU operands: expect ~1e-2-scale absolute error on a 36-term contraction.
    assert jnp.allclose(out, ref, atol=3e-2, rtol=3e-2), float(jnp.abs(out - ref).max())

    print("KERNEL_OK")
</pallas_src>

<mosaic_0001>
module attributes {stable_mosaic.version = 11 : i64} {
  func.func @_conv3x3_gelu_kernel(%arg0: i32, %arg1: memref<16x256xbf16, #tpu.memory_space<vmem>>, %arg2: memref<256x128xbf16, #tpu.memory_space<vmem>>, %arg3: memref<16x128xf32, #tpu.memory_space<vmem>>) attributes {dimension_semantics = [#tpu.dimension_semantics<parallel>], iteration_bounds = array<i64: 2>, scalar_prefetch = 0 : i64, scratch_operands = 0 : i64, tpu.core_type = #tpu.core_type<tc>, window_params = [{transform_indices = @transform_0, window_bounds = array<i64: 16, 256>}, {pipeline_mode = #tpu.pipeline_mode<synchronous>, transform_indices = @transform_1, window_bounds = array<i64: 256, 128>}, {transform_indices = @transform_2, window_bounds = array<i64: 16, 128>}]} {
    %c0 = arith.constant 0 : index
    %c0_0 = arith.constant 0 : index
    %0 = vector.load %arg1[%c0, %c0_0] : memref<16x256xbf16, #tpu.memory_space<vmem>>, vector<16x256xbf16>
    %c0_1 = arith.constant 0 : index
    %c0_2 = arith.constant 0 : index
    %1 = vector.load %arg2[%c0_1, %c0_2] : memref<256x128xbf16, #tpu.memory_space<vmem>>, vector<256x128xbf16>
    %cst = arith.constant dense<0.000000e+00> : vector<16x128xf32>
    %2 = tpu.matmul %0, %1, %cst {dimension_numbers = #tpu.dot_dimension_numbers<[1], [0], [0], [1], [0, 0, 1, 1], [], []>} : vector<16x256xbf16>, vector<256x128xbf16>, vector<16x128xf32> -> vector<16x128xf32>
    %cst_3 = arith.constant 5.000000e-01 : f32
    %3 = vector.broadcast %cst_3 : f32 to vector<16x128xf32>
    %4 = arith.mulf %3, %2 : vector<16x128xf32>
    %cst_4 = arith.constant 0.707106769 : f32
    %5 = vector.broadcast %cst_4 : f32 to vector<16x128xf32>
    %6 = arith.mulf %2, %5 : vector<16x128xf32>
    %7 = math.erf %6 : vector<16x128xf32>
    %cst_5 = arith.constant 1.000000e+00 : f32
    %8 = vector.broadcast %cst_5 : f32 to vector<16x128xf32>
    %9 = arith.addf %8, %7 : vector<16x128xf32>
    %10 = arith.mulf %4, %9 : vector<16x128xf32>
    %c0_6 = arith.constant 0 : index
    %c0_7 = arith.constant 0 : index
    %11 = vector.load %arg3[%c0_6, %c0_7] : memref<16x128xf32, #tpu.memory_space<vmem>>, vector<16x128xf32>
    tpu.vector_store %arg3[%c0_6, %c0_7], %10 {strides = array<i32>} : memref<16x128xf32, #tpu.memory_space<vmem>>, vector<16x128xf32>,
    return
  }
  func.func @transform_0(%arg0: i32) -> (i32, i32) {
    %c0_i32 = arith.constant 0 : i32
    %c0_i32_0 = arith.constant 0 : i32
    return %arg0, %c0_i32 : i32, i32
  }
  func.func @transform_1(%arg0: i32) -> (i32, i32) {
    %c0_i32 = arith.constant 0 : i32
    %c0_i32_0 = arith.constant 0 : i32
    %c0_i32_1 = arith.constant 0 : i32
    return %c0_i32, %c0_i32_0 : i32, i32
  }
  func.func @transform_2(%arg0: i32) -> (i32, i32) {
    %c0_i32 = arith.constant 0 : i32
    %c0_i32_0 = arith.constant 0 : i32
    return %arg0, %c0_i32 : i32, i32
  }
}

module attributes {stable_mosaic.version = 11 : i64} {
  func.func @_conv3x3_gelu_kernel(%arg0: i32, %arg1: memref<16x256xbf16, #tpu.memory_space<vmem>>, %arg2: memref<256x128xbf16, #tpu.memory_space<vmem>>, %arg3: memref<16x128xf32, #tpu.memory_space<vmem>>) attributes {dimension_semantics = [#tpu.dimension_semantics<parallel>], iteration_bounds = array<i64: 2>, scalar_prefetch = 0 : i64, scratch_operands = 0 : i64, tpu.core_type = #tpu.core_type<tc>, window_params = [{transform_indices = @transform_0, window_bounds = array<i64: 16, 256>}, {pipeline_mode = #tpu.pipeline_mode<synchronous>, transform_indices = @transform_1, window_bounds = array<i64: 256, 128>}, {transform_indices = @transform_2, window_bounds = array<i64: 16, 128>}]} {
    %c0 = arith.constant 0 : index
    %c0_0 = arith.constant 0 : index
    %0 = vector.load %arg1[%c0, %c0_0] : memref<16x256xbf16, #tpu.memory_space<vmem>>, vector<16x256xbf16>
    %c0_1 = arith.constant 0 : index
    %c0_2 = arith.constant 0 : index
    %1 = vector.load %arg2[%c0_1, %c0_2] : memref<256x128xbf16, #tpu.memory_space<vmem>>, vector<256x128xbf16>
    %cst = arith.constant dense<0.000000e+00> : vector<16x128xf32>
    %2 = tpu.matmul %0, %1, %cst {dimension_numbers = #tpu.dot_dimension_numbers<[1], [0], [0], [1], [0, 0, 1, 1], [], []>} : vector<16x256xbf16>, vector<256x128xbf16>, vector<16x128xf32> -> vector<16x128xf32>
    %cst_3 = arith.constant 5.000000e-01 : f32
    %3 = vector.broadcast %cst_3 : f32 to vector<16x128xf32>
    %4 = arith.mulf %3, %2 : vector<16x128xf32>
    %cst_4 = arith.constant 0.707106769 : f32
    %5 = vector.broadcast %cst_4 : f32 to vector<16x128xf32>
    %6 = arith.mulf %2, %5 : vector<16x128xf32>
    %7 = math.erf %6 : vector<16x128xf32>
    %cst_5 = arith.constant 1.000000e+00 : f32
    %8 = vector.broadcast %cst_5 : f32 to vector<16x128xf32>
    %9 = arith.addf %8, %7 : vector<16x128xf32>
    %10 = arith.mulf %4, %9 : vector<16x128xf32>
    %c0_6 = arith.constant 0 : index
    %c0_7 = arith.constant 0 : index
    %11 = vector.load %arg3[%c0_6, %c0_7] : memref<16x128xf32, #tpu.memory_space<vmem>>, vector<16x128xf32>
    tpu.vector_store %arg3[%c0_6, %c0_7], %10 {strides = array<i32>} : memref<16x128xf32, #tpu.memory_space<vmem>>, vector<16x128xf32>,
    return
  }
  func.func @transform_0(%arg0: i32) -> (i32, i32) {
    %c0_i32 = arith.constant 0 : i32
    %c0_i32_0 = arith.constant 0 : i32
    return %arg0, %c0_i32 : i32, i32
  }
  func.func @transform_1(%arg0: i32) -> (i32, i32) {
    %c0_i32 = arith.constant 0 : i32
    %c0_i32_0 = arith.constant 0 : i32
    %c0_i32_1 = arith.constant 0 : i32
    return %c0_i32, %c0_i32_0 : i32, i32
  }
  func.func @transform_2(%arg0: i32) -> (i32, i32) {
    %c0_i32 = arith.constant 0 : i32
    %c0_i32_0 = arith.constant 0 : i32
    return %arg0, %c0_i32 : i32, i32
  }
}

</mosaic_0001>

<llo_original>
// kernel: tpu_custom_call.1
$region0: #{tpu_custom_call.1}
  #allocation0 [shape = 'u32[]', space=smem, size = 0x4, offset = 0x4, fixed_abs, tag = 'smem constant byte address 0x4 - core index']
  #allocation1 [shape = 'u32[144,128]{1,0:T(1,128)}', space=vmem, size = 0x12000, scoped, tag = 'internal scratch']
  %s0 = inlined_call_operand.hbm [shape: bf16[32,256], index: 0, kind: input, shape index: {}]
  %s1 = inlined_call_operand.hbm [shape: bf16[256,128], index: 1, kind: input, shape index: {}]
  %s2 = inlined_call_operand.hbm [shape: f32[32,128], index: 2, kind: output, shape index: {}]
  %s3 = sld [smem:[#allocation0]]
  $region49: #{tpu_custom_call.1} parent=0
    _
  %s5 = ssub.s32 1, %s3
  %s6 = scalar_select 0, %s5, %s3
  $region1: #{tpu_custom_call.1} parent=0
    #allocation2 [shape = 'u8[16384]{0}', space=vmem, size = 0x4000, scoped, tag = 'input window, operand 0']
    #allocation3 [shape = 's32[2]{0}', space=sflag, size = 0x8, scoped, tag = 'scoped memory for tpu_custom_call.1']
    #allocation4 [shape = 's32[2]{0}', space=sflag, size = 0x8, scoped, tag = 'scoped memory for tpu_custom_call.1']
    #allocation5 [shape = 'u8[65536]{0}', space=vmem, size = 0x10000, scoped, tag = 'input window, operand 1, single buffered']
    #allocation6 [shape = 's32[1]{0}', space=sflag, size = 0x4, scoped, tag = 'scoped memory for tpu_custom_call.1']
    #allocation7 [shape = 'u8[16384]{0}', space=vmem, size = 0x4000, scoped, tag = 'output window, operand 0']
    %7 = vsyncpa [#allocation3], 0
    %s8 = scalar_lea.sflag [#allocation3], 1
    %9 = vsyncpa %s8, 0
    %10 = vsyncpa [#allocation6], 0
    %11 = vsyncpa [#allocation4], 0
    %s12 = scalar_lea.sflag [#allocation4], 1
    %13 = vsyncpa %s12, 0
    loop: start=0, step=1, limit=4
    $region2: #{tpu_custom_call.1} parent=1 // loop_pre_header
      _
    $region3: #{tpu_custom_call.1} parent=1 // loop_header
      %s15 = sphi 0, %s19
      %p16 = scmp.ge.s32.totalorder %s15, 4
      %s25 = sphi 0, %s27
      %s28 = sphi 0, %s25
      %s29 = sphi 0, %s28
      %s45 = sphi 0, %s29
      %s49 = sphi 0, %s49
      %s51 = sphi 0, %s49
      %s52 = sphi 0, %s51
      %s66 = sphi 0, %s52
      %s72 = sphi 0, %s74
      %s75 = sphi 0, %s72
      %s76 = sphi 0, %s75
      %s92 = sphi 0, %s76
    $region4: #{tpu_custom_call.1} parent=1 // loop_header_branch
      %18 = sbr.rel (%p16) target = $region8
    $region5: #{tpu_custom_call.1} parent=1 // loop_body
      %s20 = ssub.s32 %s15, 1
      %s21 = ssub.s32 %s15, 2
      %s22 = sadd.s32 %s15, 1
      %s23 = ssub.s32 %s15, %s22
      %p24 = scmp.eq.s32.totalorder %s23, 0
      %s26 = sadd.s32 %s25, 1
      %s27 = scalar_select %p24, %s25, %s26
      %p30 = pneg %p24
      %p31 = scmp.eq.s32.totalorder %s15, 1
      %p32 = por %p30, %p31
      %p33 = scmp.ne.s32.totalorder %s25, %s28
      %p34 = scmp.eq.s32.totalorder %s15, 0
      %p35 = por %p33, %p34
      %p36 = scmp.ne.s32.totalorder %s25, %s28
      %p37 = scmp.eq.s32.totalorder %s20, 1
      %p38 = por %p36, %p37
      %p39 = scmp.ne.s32.totalorder %s28, %s29
      %p40 = scmp.eq.s32.totalorder %s20, 0
      %p41 = por %p39, %p40
      %p42 = scmp.ne.s32.totalorder %s28, %s29
      %p43 = scmp.eq.s32.totalorder %s21, 1
      %p44 = por %p42, %p43
      %p46 = scmp.ne.s32.totalorder %s29, %s45
      %p47 = scmp.eq.s32.totalorder %s21, 0
      %p48 = por %p46, %p47
      %s50 = sadd.s32 %s49, 1
      %p53 = scmp.eq.s32.totalorder %s15, 1
      %p54 = scmp.ne.s32.totalorder %s49, %s51
      %p55 = scmp.eq.s32.totalorder %s15, 0
      %p56 = por %p54, %p55
      %p57 = scmp.ne.s32.totalorder %s49, %s51
      %p58 = scmp.eq.s32.totalorder %s20, 1
      %p59 = por %p57, %p58
      %p60 = scmp.ne.s32.totalorder %s51, %s52
      %p61 = scmp.eq.s32.totalorder %s20, 0
      %p62 = por %p60, %p61
      %p63 = scmp.ne.s32.totalorder %s51, %s52
      %p64 = scmp.eq.s32.totalorder %s21, 1
      %p65 = por %p63, %p64
      %p67 = scmp.ne.s32.totalorder %s52, %s66
      %p68 = scmp.eq.s32.totalorder %s21, 0
      %p69 = por %p67, %p68
      %s70 = ssub.s32 %s15, %s22
      %p71 = scmp.eq.s32.totalorder %s70, 0
      %s73 = sadd.s32 %s72, 1
      %s74 = scalar_select %p71, %s72, %s73
      %p77 = pneg %p71
      %p78 = scmp.eq.s32.totalorder %s15, 1
      %p79 = por %p77, %p78
      %p80 = scmp.ne.s32.totalorder %s72, %s75
      %p81 = scmp.eq.s32.totalorder %s15, 0
      %p82 = por %p80, %p81
      %p83 = scmp.ne.s32.totalorder %s72, %s75
      %p84 = scmp.eq.s32.totalorder %s20, 1
      %p85 = por %p83, %p84
      %p86 = scmp.ne.s32.totalorder %s75, %s76
      %p87 = scmp.eq.s32.totalorder %s20, 0
      %p88 = por %p86, %p87
      %p89 = scmp.ne.s32.totalorder %s75, %s76
      %p90 = scmp.eq.s32.totalorder %s21, 1
      %p91 = por %p89, %p90
      %p93 = scmp.ne.s32.totalorder %s76, %s92
      %p94 = scmp.eq.s32.totalorder %s21, 0
      %p95 = por %p93, %p94
      %p96 = scmp.le.s32.totalorder 1, %s15
      %p97 = scmp.lt.s32.totalorder %s15, 3
      %p98 = pnand %p96, %p97
      %p99 = pneg %p98
      // Predicated region
      $region9: #{tpu_custom_call.1} parent=5 // pred_check
        _
      $region10: #{tpu_custom_call.1} parent=5 // pred_check_branch
        %101 = sbr.rel (%p98) target = $region12
      $region11: #{tpu_custom_call.1} parent=5 // pred_region
        %s102 = ssub.s32 %s15, 1
        // Predicated region
        $region13: #{tpu_custom_call.1} parent=11 // pred_check
          %p103 = pneg %p62
        $region14: #{tpu_custom_call.1} parent=11 // pred_check_branch
          %105 = sbr.rel (%p103) target = $region16
        $region15: #{tpu_custom_call.1} parent=11 // pred_region
          %s107 = ssub.s32 2048, 2048
          %108 = vsyncadd [#allocation6], %s107
          %s109 = sshll.u32 [#allocation5], 4
          %s110 = int_to_ptr.vmem [resolvable:$true] %s109
          %115 = dma.hbm_to_vmem [thread:$0]  %s1, 2048, %s110, [#allocation6], 64, 64, 4
        $region16: #{tpu_custom_call.1} parent=11 // pred_fallthru
          _
      $region12: #{tpu_custom_call.1} parent=5 // pred_fallthru
        _
      %p116 = scmp.lt.s32.totalorder %s15, 2
      // Predicated region
      $region17: #{tpu_custom_call.1} parent=5 // pred_check
        %p117 = pneg %p116
      $region18: #{tpu_custom_call.1} parent=5 // pred_check_branch
        %119 = sbr.rel (%p117) target = $region20
      $region19: #{tpu_custom_call.1} parent=5 // pred_region
        // Predicated region
        $region21: #{tpu_custom_call.1} parent=19 // pred_check
          %p120 = pneg %p35
        $region22: #{tpu_custom_call.1} parent=19 // pred_check_branch
          %122 = sbr.rel (%p120) target = $region24
        $region23: #{tpu_custom_call.1} parent=19 // pred_region
          %s123 = sand.u32 %s25, 1
          %s124 = scalar_lea.sflag [#allocation3], %s123
          %s125 = sand.u32 %s25, 1
          %s126 = smul.addr %s125, 16
          %s127 = scalar_lea.vmem [#allocation2], %s126
          %s128 = smul.u32 2, %s15
          %s130 = ssub.s32 256, 256
          %131 = vsyncadd %s124, %s130
          %s132 = smul.addr %s128, 2
          %s133 = smul.addr %s132, 64
          %s134 = scalar_lea.hbm %s0, %s133
          %s135 = sshll.u32 %s127, 4
          %s136 = int_to_ptr.vmem [resolvable:$true] %s135
          %141 = dma.hbm_to_vmem [thread:$0]  %s134, 256, %s136, %s124, 128, 128, 8
        $region24: #{tpu_custom_call.1} parent=19 // pred_fallthru
          _
      $region20: #{tpu_custom_call.1} parent=5 // pred_fallthru
        _
      %p142 = scmp.le.s32.totalorder 1, %s15
      %p143 = scmp.lt.s32.totalorder %s15, 3
      %p144 = pnand %p142, %p143
      %p145 = pneg %p144
      // Predicated region
      $region25: #{tpu_custom_call.1} parent=5 // pred_check
        _
      $region26: #{tpu_custom_call.1} parent=5 // pred_check_branch
        %147 = sbr.rel (%p144) target = $region28
      $region27: #{tpu_custom_call.1} parent=5 // pred_region
        %s148 = ssub.s32 %s15, 1
        %s149 = sand.u32 %s28, 1
        %s150 = scalar_lea.sflag [#allocation3], %s149
        %s151 = sand.u32 %s28, 1
        %s152 = smul.addr %s151, 16
        %s153 = scalar_lea.vmem [#allocation2], %s152
        // Predicated region
        $region29: #{tpu_custom_call.1} parent=27 // pred_check
          %p154 = pneg %p41
        $region30: #{tpu_custom_call.1} parent=27 // pred_check_branch
          %156 = sbr.rel (%p154) target = $region32
        $region31: #{tpu_custom_call.1} parent=27 // pred_region
          %157 = dma.done %s150, 256
        $region32: #{tpu_custom_call.1} parent=27 // pred_fallthru
          _
        // Predicated region
        $region33: #{tpu_custom_call.1} parent=27 // pred_check
          %p158 = pneg %p62
        $region34: #{tpu_custom_call.1} parent=27 // pred_check_branch
          %160 = sbr.rel (%p158) target = $region36
        $region35: #{tpu_custom_call.1} parent=27 // pred_region
          %161 = dma.done [#allocation6], 2048
        $region36: #{tpu_custom_call.1} parent=27 // pred_fallthru
          _
        %s162 = sand.u32 %s28, 1
        %s163 = scalar_lea.sflag [#allocation3], %s162
        %s164 = sand.u32 %s28, 1
        %s165 = smul.addr %s164, 16
        %s166 = scalar_lea.vmem [#allocation2], %s165
        %p167 = pneg %p41
        %p168 = pneg %p38
        %p169 = pneg %p62
        %p170 = pneg %p59
        %p171 = pneg %p88
        %p172 = pneg %p85
        %s173 = sand.u32 %s75, 1
        %s174 = scalar_lea.sflag [#allocation4], %s173
        %s175 = sand.u32 %s75, 1
        %s176 = smul.addr %s175, 16
        %s177 = scalar_lea.vmem [#allocation7], %s176
        %s178 = smul.u32 2, %s20
        %s179 = smul.u32 2, %s20
        %v181 = vld [vmem:[%s153] sm:$0xff]
        %v182 = vld [vmem:[%s153 + $0x8] sm:$0xff]
        %v183 = vld [vmem:[#allocation5] sm:$0xf]
        %v184 = vld [vmem:[#allocation5 + $0x4] sm:$0xf]
        %v185 = vld [vmem:[#allocation5 + $0x8] sm:$0xf]
        %v186 = vld [vmem:[#allocation5 + $0xc] sm:$0xf]
        %v187 = vld [vmem:[#allocation5 + $0x10] sm:$0xf]
        %v188 = vld [vmem:[#allocation5 + $0x14] sm:$0xf]
        %v189 = vld [vmem:[#allocation5 + $0x18] sm:$0xf]
        %v190 = vld [vmem:[#allocation5 + $0x1c] sm:$0xf]
        %v191 = vld [vmem:[#allocation5 + $0x20] sm:$0xf]
        %v192 = vld [vmem:[#allocation5 + $0x24] sm:$0xf]
        %v193 = vld [vmem:[#allocation5 + $0x28] sm:$0xf]
        %v194 = vld [vmem:[#allocation5 + $0x2c] sm:$0xf]
        %v195 = vld [vmem:[#allocation5 + $0x30] sm:$0xf]
        %v196 = vld [vmem:[#allocation5 + $0x34] sm:$0xf]
        %v197 = vld [vmem:[#allocation5 + $0x38] sm:$0xf]
        %v198 = vld [vmem:[#allocation5 + $0x3c] sm:$0xf]
        %v199 = vld [vmem:[#allocation5 + $0x40] sm:$0xf]
        %v200 = vld [vmem:[#allocation5 + $0x44] sm:$0xf]
        %v201 = vld [vmem:[#allocation5 + $0x48] sm:$0xf]
        %v202 = vld [vmem:[#allocation5 + $0x4c] sm:$0xf]
        %v203 = vld [vmem:[#allocation5 + $0x50] sm:$0xf]
        %v204 = vld [vmem:[#allocation5 + $0x54] sm:$0xf]
        %v205 = vld [vmem:[#allocation5 + $0x58] sm:$0xf]
        %v206 = vld [vmem:[#allocation5 + $0x5c] sm:$0xf]
        %v207 = vld [vmem:[#allocation5 + $0x60] sm:$0xf]
        %v208 = vld [vmem:[#allocation5 + $0x64] sm:$0xf]
        %v209 = vld [vmem:[#allocation5 + $0x68] sm:$0xf]
        %v210 = vld [vmem:[#allocation5 + $0x6c] sm:$0xf]
        %v211 = vld [vmem:[#allocation5 + $0x70] sm:$0xf]
        %v212 = vld [vmem:[#allocation5 + $0x74] sm:$0xf]
        %v213 = vld [vmem:[#allocation5 + $0x78] sm:$0xf]
        %v214 = vld [vmem:[#allocation5 + $0x7c] sm:$0xf]
        %v217 = vunpack.c.l.b16 %v181
        %v218 = vunpack.c.h.b16 %v181
        %v219 = vunpack.c.l.b16 %v182
        %v220 = vunpack.c.h.b16 %v182
        %v221 = vpack.c.b16 %v219, %v217
        %v222 = vpack.c.b16 %v220, %v218
        %v257 = vunpack.c.l.b16 %v183
        %v258 = vunpack.c.l.b16 %v184
        %v259 = vunpack.c.l.b16 %v185
        %v260 = vunpack.c.l.b16 %v186
        %v261 = vunpack.c.l.b16 %v187
        %v262 = vunpack.c.l.b16 %v188
        %v263 = vunpack.c.l.b16 %v189
        %v264 = vunpack.c.l.b16 %v190
        %v265 = vunpack.c.l.b16 %v191
        %v266 = vunpack.c.l.b16 %v192
        %v267 = vunpack.c.l.b16 %v193
        %v268 = vunpack.c.l.b16 %v194
        %v269 = vunpack.c.l.b16 %v195
        %v270 = vunpack.c.l.b16 %v196
        %v271 = vunpack.c.l.b16 %v197
        %v272 = vunpack.c.l.b16 %v198
        %v273 = vunpack.c.l.b16 %v199
        %v274 = vunpack.c.l.b16 %v200
        %v275 = vunpack.c.l.b16 %v201
        %v276 = vunpack.c.l.b16 %v202
        %v277 = vunpack.c.l.b16 %v203
        %v278 = vunpack.c.l.b16 %v204
        %v279 = vunpack.c.l.b16 %v205
        %v280 = vunpack.c.l.b16 %v206
        %v281 = vunpack.c.l.b16 %v207
        %v282 = vunpack.c.l.b16 %v208
        %v283 = vunpack.c.l.b16 %v209
        %v284 = vunpack.c.l.b16 %v210
        %v285 = vunpack.c.l.b16 %v211
        %v286 = vunpack.c.l.b16 %v212
        %v287 = vunpack.c.l.b16 %v213
        %v288 = vunpack.c.l.b16 %v214
        %v289 = vpack.c.b16 %v258, %v257
        %v290 = vpack.c.b16 %v260, %v259
        %v291 = vpack.c.b16 %v262, %v261
        %v292 = vpack.c.b16 %v264, %v263
        %v293 = vpack.c.b16 %v266, %v265
        %v294 = vpack.c.b16 %v268, %v267
        %v295 = vpack.c.b16 %v270, %v269
        %v296 = vpack.c.b16 %v272, %v271
        %v297 = vpack.c.b16 %v274, %v273
        %v298 = vpack.c.b16 %v276, %v275
        %v299 = vpack.c.b16 %v278, %v277
        %v300 = vpack.c.b16 %v280, %v279
        %v301 = vpack.c.b16 %v282, %v281
        %v302 = vpack.c.b16 %v284, %v283
        %v303 = vpack.c.b16 %v286, %v285
        %v304 = vpack.c.b16 %v288, %v287
        %321 = vmatprep.subr.bf16.mxu0 0
        %322 = vmatpush1.bf16.msra.mxu0 %v296
        %323 = vmatprep.subr.bf16.mxu0 0
        %324 = vmatpush1.bf16.msra.mxu0 %v295
        %325 = vmatprep.subr.bf16.mxu0 0
        %326 = vmatpush1.bf16.msra.mxu0 %v294
        %327 = vmatprep.subr.bf16.mxu0 0
        %328 = vmatpush1.bf16.msra.mxu0 %v293
        %329 = vmatprep.subr.bf16.mxu0 0
        %330 = vmatpush1.bf16.msra.mxu0 %v292
        %331 = vmatprep.subr.bf16.mxu0 0
        %332 = vmatpush1.bf16.msra.mxu0 %v291
        %333 = vmatprep.subr.bf16.mxu0 0
        %334 = vmatpush1.bf16.msra.mxu0 %v290
        %335 = vmatprep.subr.bf16.mxu0 0
        %336 = vmatpush1.bf16.msra.mxu0 %v289
        %337 = vmatprep.subr.bf16.mxu0 0
        %338 = vmatpush2.bf16.msra.mxu0 %v304
        %339 = vmatprep.subr.bf16.mxu0 0
        %340 = vmatpush2.bf16.msra.mxu0 %v303
        %341 = vmatprep.subr.bf16.mxu0 0
        %342 = vmatpush2.bf16.msra.mxu0 %v302
        %343 = vmatprep.subr.bf16.mxu0 0
        %344 = vmatpush2.bf16.msra.mxu0 %v301
        %345 = vmatprep.subr.bf16.mxu0 0
        %346 = vmatpush2.bf16.msra.mxu0 %v300
        %347 = vmatprep.subr.bf16.mxu0 0
        %348 = vmatpush2.bf16.msra.mxu0 %v299
        %349 = vmatprep.subr.bf16.mxu0 0
        %350 = vmatpush2.bf16.msra.mxu0 %v298
        %351 = vmatprep.subr.bf16.mxu0 0
        %352 = vmatpush2.bf16.msra.mxu0 %v297
        %353 = vmatprep.mubr.bf16.mxu0 %v222
        %354 = vmatmul.mubr.bf16.gmra.mxu0 %v221
        %v355 = vpop.f32.mrf.mxu0
        %v356 = vadd.f32 0.0, %v355
        %v357 = vpop.f32.mrf.mxu0
        %v358 = vpop.f32.mrf.mxu0
        %v359 = vadd.f32 0.0, %v358
        %v360 = vpop.f32.mrf.mxu0
        %361 = vdwg.mxu0
        %v362 = vmul.f32 %v356, 0.5
        %v363 = vmul.f32 %v359, 0.5
        %v364 = vmul.f32 %v356, 0.70710677
        %v365 = vmul.f32 %v359, 0.70710677
        %v366 = verf.f32.pop %v364
        %v367 = verf.f32.pop %v365
        %v368 = vadd.f32 %v366, 1.0
        %v369 = vadd.f32 %v367, 1.0
        %v370 = vmul.f32 %v362, %v368
        %v371 = vmul.f32 %v363, %v369
        %372 = vst [vmem:[%s177] sm:$0xff] %v370
        %373 = vst [vmem:[%s177 + $0x8] sm:$0xff] %v371
        %s374 = sand.u32 %s75, 1
        %s375 = scalar_lea.sflag [#allocation4], %s374
        %s376 = sand.u32 %s75, 1
        %s377 = smul.addr %s376, 16
        %s378 = scalar_lea.vmem [#allocation7], %s377
        // Predicated region
        $region37: #{tpu_custom_call.1} parent=27 // pred_check
          %p379 = pneg %p85
        $region38: #{tpu_custom_call.1} parent=27 // pred_check_branch
          %381 = sbr.rel (%p379) target = $region40
        $region39: #{tpu_custom_call.1} parent=27 // pred_region
          %s382 = smul.u32 2, %s20
          %s384 = ssub.s32 256, 256
          %385 = vsyncadd %s375, %s384
          %s386 = smul.addr %s382, 128
          %s387 = scalar_lea.hbm %s2, %s386
          %s388 = sshll.u32 %s378, 4
          %s389 = int_to_ptr.vmem [resolvable:$true] %s388
          %394 = dma.vmem_to_hbm [thread:$0]  %s389, 256, %s387, %s375, 128, 128, 8
        $region40: #{tpu_custom_call.1} parent=27 // pred_fallthru
          _
      $region28: #{tpu_custom_call.1} parent=5 // pred_fallthru
        _
      %p395 = scmp.le.s32.totalorder 2, %s15
      // Predicated region
      $region41: #{tpu_custom_call.1} parent=5 // pred_check
        %p396 = pneg %p395
      $region42: #{tpu_custom_call.1} parent=5 // pred_check_branch
        %398 = sbr.rel (%p396) target = $region44
      $region43: #{tpu_custom_call.1} parent=5 // pred_region
        %s399 = ssub.s32 %s15, 2
        // Predicated region
        $region45: #{tpu_custom_call.1} parent=43 // pred_check
          %p400 = pneg %p91
        $region46: #{tpu_custom_call.1} parent=43 // pred_check_branch
          %402 = sbr.rel (%p400) target = $region48
        $region47: #{tpu_custom_call.1} parent=43 // pred_region
          %s403 = sand.u32 %s76, 1
          %s404 = scalar_lea.sflag [#allocation4], %s403
          %s405 = sand.u32 %s76, 1
          %s406 = smul.addr %s405, 16
          %s407 = scalar_lea.vmem [#allocation7], %s406
          %408 = dma.done %s404, 256
        $region48: #{tpu_custom_call.1} parent=43 // pred_fallthru
          _
      $region44: #{tpu_custom_call.1} parent=5 // pred_fallthru
        _
    $region6: #{tpu_custom_call.1} parent=1 // loop_footer
      %s19 = sadd.s32 1, %s15
    $region7: #{tpu_custom_call.1} parent=1 // loop_footer_branch
      %14 = sbr.rel target = $region3
    $region8: #{tpu_custom_call.1} parent=1 // loop_exit
      _
    %409 = vsyncpa [#allocation3], 1
    %s410 = scalar_lea.sflag [#allocation3], 1
    %411 = vsyncpa %s410, 1
    %412 = vsyncpa [#allocation6], 1
    %413 = vsyncpa [#allocation4], 1
    %s414 = scalar_lea.sflag [#allocation4], 1
    %415 = vsyncpa %s414, 1

// kernel: tpu_custom_call.1
$region0: #{tpu_custom_call.1}
  #allocation0 [shape = 'u32[]', space=smem, size = 0x4, offset = 0x4, fixed_abs, tag = 'smem constant byte address 0x4 - core index']
  #allocation1 [shape = 'u32[144,128]{1,0:T(1,128)}', space=vmem, size = 0x12000, scoped, tag = 'internal scratch']
  %s0 = inlined_call_operand.hbm [shape: bf16[32,256], index: 0, kind: input, shape index: {}]
  %s1 = inlined_call_operand.hbm [shape: bf16[256,128], index: 1, kind: input, shape index: {}]
  %s2 = inlined_call_operand.hbm [shape: f32[32,128], index: 2, kind: output, shape index: {}]
  %s3 = sld [smem:[#allocation0]]
  $region49: #{tpu_custom_call.1} parent=0
    _
  %s5 = ssub.s32 1, %s3
  %s6 = scalar_select 0, %s5, %s3
  $region1: #{tpu_custom_call.1} parent=0
    #allocation2 [shape = 'u8[16384]{0}', space=vmem, size = 0x4000, scoped, tag = 'input window, operand 0']
    #allocation3 [shape = 's32[2]{0}', space=sflag, size = 0x8, scoped, tag = 'scoped memory for tpu_custom_call.1']
    #allocation4 [shape = 's32[2]{0}', space=sflag, size = 0x8, scoped, tag = 'scoped memory for tpu_custom_call.1']
    #allocation5 [shape = 'u8[65536]{0}', space=vmem, size = 0x10000, scoped, tag = 'input window, operand 1, single buffered']
    #allocation6 [shape = 's32[1]{0}', space=sflag, size = 0x4, scoped, tag = 'scoped memory for tpu_custom_call.1']
    #allocation7 [shape = 'u8[16384]{0}', space=vmem, size = 0x4000, scoped, tag = 'output window, operand 0']
    %7 = vsyncpa [#allocation3], 0
    %s8 = scalar_lea.sflag [#allocation3], 1
    %9 = vsyncpa %s8, 0
    %10 = vsyncpa [#allocation6], 0
    %11 = vsyncpa [#allocation4], 0
    %s12 = scalar_lea.sflag [#allocation4], 1
    %13 = vsyncpa %s12, 0
    loop: start=0, step=1, limit=4
    $region2: #{tpu_custom_call.1} parent=1 // loop_pre_header
      _
    $region3: #{tpu_custom_call.1} parent=1 // loop_header
      %s15 = sphi 0, %s19
      %p16 = scmp.ge.s32.totalorder %s15, 4
      %s25 = sphi 0, %s27
      %s28 = sphi 0, %s25
      %s29 = sphi 0, %s28
      %s45 = sphi 0, %s29
      %s49 = sphi 0, %s49
      %s51 = sphi 0, %s49
      %s52 = sphi 0, %s51
      %s66 = sphi 0, %s52
      %s72 = sphi 0, %s74
      %s75 = sphi 0, %s72
      %s76 = sphi 0, %s75
      %s92 = sphi 0, %s76
    $region4: #{tpu_custom_call.1} parent=1 // loop_header_branch
      %18 = sbr.rel (%p16) target = $region8
    $region5: #{tpu_custom_call.1} parent=1 // loop_body
      %s20 = ssub.s32 %s15, 1
      %s21 = ssub.s32 %s15, 2
      %s22 = sadd.s32 %s15, 1
      %s23 = ssub.s32 %s15, %s22
      %p24 = scmp.eq.s32.totalorder %s23, 0
      %s26 = sadd.s32 %s25, 1
      %s27 = scalar_select %p24, %s25, %s26
      %p30 = pneg %p24
      %p31 = scmp.eq.s32.totalorder %s15, 1
      %p32 = por %p30, %p31
      %p33 = scmp.ne.s32.totalorder %s25, %s28
      %p34 = scmp.eq.s32.totalorder %s15, 0
      %p35 = por %p33, %p34
      %p36 = scmp.ne.s32.totalorder %s25, %s28
      %p37 = scmp.eq.s32.totalorder %s20, 1
      %p38 = por %p36, %p37
      %p39 = scmp.ne.s32.totalorder %s28, %s29
      %p40 = scmp.eq.s32.totalorder %s20, 0
      %p41 = por %p39, %p40
      %p42 = scmp.ne.s32.totalorder %s28, %s29
      %p43 = scmp.eq.s32.totalorder %s21, 1
      %p44 = por %p42, %p43
      %p46 = scmp.ne.s32.totalorder %s29, %s45
      %p47 = scmp.eq.s32.totalorder %s21, 0
      %p48 = por %p46, %p47
      %s50 = sadd.s32 %s49, 1
      %p53 = scmp.eq.s32.totalorder %s15, 1
      %p54 = scmp.ne.s32.totalorder %s49, %s51
      %p55 = scmp.eq.s32.totalorder %s15, 0
      %p56 = por %p54, %p55
      %p57 = scmp.ne.s32.totalorder %s49, %s51
      %p58 = scmp.eq.s32.totalorder %s20, 1
      %p59 = por %p57, %p58
      %p60 = scmp.ne.s32.totalorder %s51, %s52
      %p61 = scmp.eq.s32.totalorder %s20, 0
      %p62 = por %p60, %p61
      %p63 = scmp.ne.s32.totalorder %s51, %s52
      %p64 = scmp.eq.s32.totalorder %s21, 1
      %p65 = por %p63, %p64
      %p67 = scmp.ne.s32.totalorder %s52, %s66
      %p68 = scmp.eq.s32.totalorder %s21, 0
      %p69 = por %p67, %p68
      %s70 = ssub.s32 %s15, %s22
      %p71 = scmp.eq.s32.totalorder %s70, 0
      %s73 = sadd.s32 %s72, 1
      %s74 = scalar_select %p71, %s72, %s73
      %p77 = pneg %p71
      %p78 = scmp.eq.s32.totalorder %s15, 1
      %p79 = por %p77, %p78
      %p80 = scmp.ne.s32.totalorder %s72, %s75
      %p81 = scmp.eq.s32.totalorder %s15, 0
      %p82 = por %p80, %p81
      %p83 = scmp.ne.s32.totalorder %s72, %s75
      %p84 = scmp.eq.s32.totalorder %s20, 1
      %p85 = por %p83, %p84
      %p86 = scmp.ne.s32.totalorder %s75, %s76
      %p87 = scmp.eq.s32.totalorder %s20, 0
      %p88 = por %p86, %p87
      %p89 = scmp.ne.s32.totalorder %s75, %s76
      %p90 = scmp.eq.s32.totalorder %s21, 1
      %p91 = por %p89, %p90
      %p93 = scmp.ne.s32.totalorder %s76, %s92
      %p94 = scmp.eq.s32.totalorder %s21, 0
      %p95 = por %p93, %p94
      %p96 = scmp.le.s32.totalorder 1, %s15
      %p97 = scmp.lt.s32.totalorder %s15, 3
      %p98 = pnand %p96, %p97
      %p99 = pneg %p98
      // Predicated region
      $region9: #{tpu_custom_call.1} parent=5 // pred_check
        _
      $region10: #{tpu_custom_call.1} parent=5 // pred_check_branch
        %101 = sbr.rel (%p98) target = $region12
      $region11: #{tpu_custom_call.1} parent=5 // pred_region
        %s102 = ssub.s32 %s15, 1
        // Predicated region
        $region13: #{tpu_custom_call.1} parent=11 // pred_check
          %p103 = pneg %p62
        $region14: #{tpu_custom_call.1} parent=11 // pred_check_branch
          %105 = sbr.rel (%p103) target = $region16
        $region15: #{tpu_custom_call.1} parent=11 // pred_region
          %s107 = ssub.s32 2048, 2048
          %108 = vsyncadd [#allocation6], %s107
          %s109 = sshll.u32 [#allocation5], 4
          %s110 = int_to_ptr.vmem [resolvable:$true] %s109
          %115 = dma.hbm_to_vmem [thread:$0]  %s1, 2048, %s110, [#allocation6], 64, 64, 4
        $region16: #{tpu_custom_call.1} parent=11 // pred_fallthru
          _
      $region12: #{tpu_custom_call.1} parent=5 // pred_fallthru
        _
      %p116 = scmp.lt.s32.totalorder %s15, 2
      // Predicated region
      $region17: #{tpu_custom_call.1} parent=5 // pred_check
        %p117 = pneg %p116
      $region18: #{tpu_custom_call.1} parent=5 // pred_check_branch
        %119 = sbr.rel (%p117) target = $region20
      $region19: #{tpu_custom_call.1} parent=5 // pred_region
        // Predicated region
        $region21: #{tpu_custom_call.1} parent=19 // pred_check
          %p120 = pneg %p35
        $region22: #{tpu_custom_call.1} parent=19 // pred_check_branch
          %122 = sbr.rel (%p120) target = $region24
        $region23: #{tpu_custom_call.1} parent=19 // pred_region
          %s123 = sand.u32 %s25, 1
          %s124 = scalar_lea.sflag [#allocation3], %s123
          %s125 = sand.u32 %s25, 1
          %s126 = smul.addr %s125, 16
          %s127 = scalar_lea.vmem [#allocation2], %s126
          %s128 = smul.u32 2, %s15
          %s130 = ssub.s32 256, 256
          %131 = vsyncadd %s124, %s130
          %s132 = smul.addr %s128, 2
          %s133 = smul.addr %s132, 64
          %s134 = scalar_lea.hbm %s0, %s133
          %s135 = sshll.u32 %s127, 4
          %s136 = int_to_ptr.vmem [resolvable:$true] %s135
          %141 = dma.hbm_to_vmem [thread:$0]  %s134, 256, %s136, %s124, 128, 128, 8
        $region24: #{tpu_custom_call.1} parent=19 // pred_fallthru
          _
      $region20: #{tpu_custom_call.1} parent=5 // pred_fallthru
        _
      %p142 = scmp.le.s32.totalorder 1, %s15
      %p143 = scmp.lt.s32.totalorder %s15, 3
      %p144 = pnand %p142, %p143
      %p145 = pneg %p144
      // Predicated region
      $region25: #{tpu_custom_call.1} parent=5 // pred_check
        _
      $region26: #{tpu_custom_call.1} parent=5 // pred_check_branch
        %147 = sbr.rel (%p144) target = $region28
      $region27: #{tpu_custom_call.1} parent=5 // pred_region
        %s148 = ssub.s32 %s15, 1
        %s149 = sand.u32 %s28, 1
        %s150 = scalar_lea.sflag [#allocation3], %s149
        %s151 = sand.u32 %s28, 1
        %s152 = smul.addr %s151, 16
        %s153 = scalar_lea.vmem [#allocation2], %s152
        // Predicated region
        $region29: #{tpu_custom_call.1} parent=27 // pred_check
          %p154 = pneg %p41
        $region30: #{tpu_custom_call.1} parent=27 // pred_check_branch
          %156 = sbr.rel (%p154) target = $region32
        $region31: #{tpu_custom_call.1} parent=27 // pred_region
          %157 = dma.done %s150, 256
        $region32: #{tpu_custom_call.1} parent=27 // pred_fallthru
          _
        // Predicated region
        $region33: #{tpu_custom_call.1} parent=27 // pred_check
          %p158 = pneg %p62
        $region34: #{tpu_custom_call.1} parent=27 // pred_check_branch
          %160 = sbr.rel (%p158) target = $region36
        $region35: #{tpu_custom_call.1} parent=27 // pred_region
          %161 = dma.done [#allocation6], 2048
        $region36: #{tpu_custom_call.1} parent=27 // pred_fallthru
          _
        %s162 = sand.u32 %s28, 1
        %s163 = scalar_lea.sflag [#allocation3], %s162
        %s164 = sand.u32 %s28, 1
        %s165 = smul.addr %s164, 16
        %s166 = scalar_lea.vmem [#allocation2], %s165
        %p167 = pneg %p41
        %p168 = pneg %p38
        %p169 = pneg %p62
        %p170 = pneg %p59
        %p171 = pneg %p88
        %p172 = pneg %p85
        %s173 = sand.u32 %s75, 1
        %s174 = scalar_lea.sflag [#allocation4], %s173
        %s175 = sand.u32 %s75, 1
        %s176 = smul.addr %s175, 16
        %s177 = scalar_lea.vmem [#allocation7], %s176
        %s178 = smul.u32 2, %s20
        %s179 = smul.u32 2, %s20
        %v181 = vld [vmem:[%s153] sm:$0xff]
        %v182 = vld [vmem:[%s153 + $0x8] sm:$0xff]
        %v183 = vld [vmem:[#allocation5] sm:$0xf]
        %v184 = vld [vmem:[#allocation5 + $0x4] sm:$0xf]
        %v185 = vld [vmem:[#allocation5 + $0x8] sm:$0xf]
        %v186 = vld [vmem:[#allocation5 + $0xc] sm:$0xf]
        %v187 = vld [vmem:[#allocation5 + $0x10] sm:$0xf]
        %v188 = vld [vmem:[#allocation5 + $0x14] sm:$0xf]
        %v189 = vld [vmem:[#allocation5 + $0x18] sm:$0xf]
        %v190 = vld [vmem:[#allocation5 + $0x1c] sm:$0xf]
        %v191 = vld [vmem:[#allocation5 + $0x20] sm:$0xf]
        %v192 = vld [vmem:[#allocation5 + $0x24] sm:$0xf]
        %v193 = vld [vmem:[#allocation5 + $0x28] sm:$0xf]
        %v194 = vld [vmem:[#allocation5 + $0x2c] sm:$0xf]
        %v195 = vld [vmem:[#allocation5 + $0x30] sm:$0xf]
        %v196 = vld [vmem:[#allocation5 + $0x34] sm:$0xf]
        %v197 = vld [vmem:[#allocation5 + $0x38] sm:$0xf]
        %v198 = vld [vmem:[#allocation5 + $0x3c] sm:$0xf]
        %v199 = vld [vmem:[#allocation5 + $0x40] sm:$0xf]
        %v200 = vld [vmem:[#allocation5 + $0x44] sm:$0xf]
        %v201 = vld [vmem:[#allocation5 + $0x48] sm:$0xf]
        %v202 = vld [vmem:[#allocation5 + $0x4c] sm:$0xf]
        %v203 = vld [vmem:[#allocation5 + $0x50] sm:$0xf]
        %v204 = vld [vmem:[#allocation5 + $0x54] sm:$0xf]
        %v205 = vld [vmem:[#allocation5 + $0x58] sm:$0xf]
        %v206 = vld [vmem:[#allocation5 + $0x5c] sm:$0xf]
        %v207 = vld [vmem:[#allocation5 + $0x60] sm:$0xf]
        %v208 = vld [vmem:[#allocation5 + $0x64] sm:$0xf]
        %v209 = vld [vmem:[#allocation5 + $0x68] sm:$0xf]
        %v210 = vld [vmem:[#allocation5 + $0x6c] sm:$0xf]
        %v211 = vld [vmem:[#allocation5 + $0x70] sm:$0xf]
        %v212 = vld [vmem:[#allocation5 + $0x74] sm:$0xf]
        %v213 = vld [vmem:[#allocation5 + $0x78] sm:$0xf]
        %v214 = vld [vmem:[#allocation5 + $0x7c] sm:$0xf]
        %v217 = vunpack.c.l.b16 %v181
        %v218 = vunpack.c.h.b16 %v181
        %v219 = vunpack.c.l.b16 %v182
        %v220 = vunpack.c.h.b16 %v182
        %v221 = vpack.c.b16 %v219, %v217
        %v222 = vpack.c.b16 %v220, %v218
        %v257 = vunpack.c.l.b16 %v183
        %v258 = vunpack.c.l.b16 %v184
        %v259 = vunpack.c.l.b16 %v185
        %v260 = vunpack.c.l.b16 %v186
        %v261 = vunpack.c.l.b16 %v187
        %v262 = vunpack.c.l.b16 %v188
        %v263 = vunpack.c.l.b16 %v189
        %v264 = vunpack.c.l.b16 %v190
        %v265 = vunpack.c.l.b16 %v191
        %v266 = vunpack.c.l.b16 %v192
        %v267 = vunpack.c.l.b16 %v193
        %v268 = vunpack.c.l.b16 %v194
        %v269 = vunpack.c.l.b16 %v195
        %v270 = vunpack.c.l.b16 %v196
        %v271 = vunpack.c.l.b16 %v197
        %v272 = vunpack.c.l.b16 %v198
        %v273 = vunpack.c.l.b16 %v199
        %v274 = vunpack.c.l.b16 %v200
        %v275 = vunpack.c.l.b16 %v201
        %v276 = vunpack.c.l.b16 %v202
        %v277 = vunpack.c.l.b16 %v203
        %v278 = vunpack.c.l.b16 %v204
        %v279 = vunpack.c.l.b16 %v205
        %v280 = vunpack.c.l.b16 %v206
        %v281 = vunpack.c.l.b16 %v207
        %v282 = vunpack.c.l.b16 %v208
        %v283 = vunpack.c.l.b16 %v209
        %v284 = vunpack.c.l.b16 %v210
        %v285 = vunpack.c.l.b16 %v211
        %v286 = vunpack.c.l.b16 %v212
        %v287 = vunpack.c.l.b16 %v213
        %v288 = vunpack.c.l.b16 %v214
        %v289 = vpack.c.b16 %v258, %v257
        %v290 = vpack.c.b16 %v260, %v259
        %v291 = vpack.c.b16 %v262, %v261
        %v292 = vpack.c.b16 %v264, %v263
        %v293 = vpack.c.b16 %v266, %v265
        %v294 = vpack.c.b16 %v268, %v267
        %v295 = vpack.c.b16 %v270, %v269
        %v296 = vpack.c.b16 %v272, %v271
        %v297 = vpack.c.b16 %v274, %v273
        %v298 = vpack.c.b16 %v276, %v275
        %v299 = vpack.c.b16 %v278, %v277
        %v300 = vpack.c.b16 %v280, %v279
        %v301 = vpack.c.b16 %v282, %v281
        %v302 = vpack.c.b16 %v284, %v283
        %v303 = vpack.c.b16 %v286, %v285
        %v304 = vpack.c.b16 %v288, %v287
        %321 = vmatprep.subr.bf16.mxu0 0
        %322 = vmatpush1.bf16.msra.mxu0 %v296
        %323 = vmatprep.subr.bf16.mxu0 0
        %324 = vmatpush1.bf16.msra.mxu0 %v295
        %325 = vmatprep.subr.bf16.mxu0 0
        %326 = vmatpush1.bf16.msra.mxu0 %v294
        %327 = vmatprep.subr.bf16.mxu0 0
        %328 = vmatpush1.bf16.msra.mxu0 %v293
        %329 = vmatprep.subr.bf16.mxu0 0
        %330 = vmatpush1.bf16.msra.mxu0 %v292
        %331 = vmatprep.subr.bf16.mxu0 0
        %332 = vmatpush1.bf16.msra.mxu0 %v291
        %333 = vmatprep.subr.bf16.mxu0 0
        %334 = vmatpush1.bf16.msra.mxu0 %v290
        %335 = vmatprep.subr.bf16.mxu0 0
        %336 = vmatpush1.bf16.msra.mxu0 %v289
        %337 = vmatprep.subr.bf16.mxu0 0
        %338 = vmatpush2.bf16.msra.mxu0 %v304
        %339 = vmatprep.subr.bf16.mxu0 0
        %340 = vmatpush2.bf16.msra.mxu0 %v303
        %341 = vmatprep.subr.bf16.mxu0 0
        %342 = vmatpush2.bf16.msra.mxu0 %v302
        %343 = vmatprep.subr.bf16.mxu0 0
        %344 = vmatpush2.bf16.msra.mxu0 %v301
        %345 = vmatprep.subr.bf16.mxu0 0
        %346 = vmatpush2.bf16.msra.mxu0 %v300
        %347 = vmatprep.subr.bf16.mxu0 0
        %348 = vmatpush2.bf16.msra.mxu0 %v299
        %349 = vmatprep.subr.bf16.mxu0 0
        %350 = vmatpush2.bf16.msra.mxu0 %v298
        %351 = vmatprep.subr.bf16.mxu0 0
        %352 = vmatpush2.bf16.msra.mxu0 %v297
        %353 = vmatprep.mubr.bf16.mxu0 %v222
        %354 = vmatmul.mubr.bf16.gmra.mxu0 %v221
        %v355 = vpop.f32.mrf.mxu0
        %v356 = vadd.f32 0.0, %v355
        %v357 = vpop.f32.mrf.mxu0
        %v358 = vpop.f32.mrf.mxu0
        %v359 = vadd.f32 0.0, %v358
        %v360 = vpop.f32.mrf.mxu0
        %361 = vdwg.mxu0
        %v362 = vmul.f32 %v356, 0.5
        %v363 = vmul.f32 %v359, 0.5
        %v364 = vmul.f32 %v356, 0.70710677
        %v365 = vmul.f32 %v359, 0.70710677
        %v366 = verf.f32.pop %v364
        %v367 = verf.f32.pop %v365
        %v368 = vadd.f32 %v366, 1.0
        %v369 = vadd.f32 %v367, 1.0
        %v370 = vmul.f32 %v362, %v368
        %v371 = vmul.f32 %v363, %v369
        %372 = vst [vmem:[%s177] sm:$0xff] %v370
        %373 = vst [vmem:[%s177 + $0x8] sm:$0xff] %v371
        %s374 = sand.u32 %s75, 1
        %s375 = scalar_lea.sflag [#allocation4], %s374
        %s376 = sand.u32 %s75, 1
        %s377 = smul.addr %s376, 16
        %s378 = scalar_lea.vmem [#allocation7], %s377
        // Predicated region
        $region37: #{tpu_custom_call.1} parent=27 // pred_check
          %p379 = pneg %p85
        $region38: #{tpu_custom_call.1} parent=27 // pred_check_branch
          %381 = sbr.rel (%p379) target = $region40
        $region39: #{tpu_custom_call.1} parent=27 // pred_region
          %s382 = smul.u32 2, %s20
          %s384 = ssub.s32 256, 256
          %385 = vsyncadd %s375, %s384
          %s386 = smul.addr %s382, 128
          %s387 = scalar_lea.hbm %s2, %s386
          %s388 = sshll.u32 %s378, 4
          %s389 = int_to_ptr.vmem [resolvable:$true] %s388
          %394 = dma.vmem_to_hbm [thread:$0]  %s389, 256, %s387, %s375, 128, 128, 8
        $region40: #{tpu_custom_call.1} parent=27 // pred_fallthru
          _
      $region28: #{tpu_custom_call.1} parent=5 // pred_fallthru
        _
      %p395 = scmp.le.s32.totalorder 2, %s15
      // Predicated region
      $region41: #{tpu_custom_call.1} parent=5 // pred_check
        %p396 = pneg %p395
      $region42: #{tpu_custom_call.1} parent=5 // pred_check_branch
        %398 = sbr.rel (%p396) target = $region44
      $region43: #{tpu_custom_call.1} parent=5 // pred_region
        %s399 = ssub.s32 %s15, 2
        // Predicated region
        $region45: #{tpu_custom_call.1} parent=43 // pred_check
          %p400 = pneg %p91
        $region46: #{tpu_custom_call.1} parent=43 // pred_check_branch
          %402 = sbr.rel (%p400) target = $region48
        $region47: #{tpu_custom_call.1} parent=43 // pred_region
          %s403 = sand.u32 %s76, 1
          %s404 = scalar_lea.sflag [#allocation4], %s403
          %s405 = sand.u32 %s76, 1
          %s406 = smul.addr %s405, 16
          %s407 = scalar_lea.vmem [#allocation7], %s406
          %408 = dma.done %s404, 256
        $region48: #{tpu_custom_call.1} parent=43 // pred_fallthru
          _
      $region44: #{tpu_custom_call.1} parent=5 // pred_fallthru
        _
    $region6: #{tpu_custom_call.1} parent=1 // loop_footer
      %s19 = sadd.s32 1, %s15
    $region7: #{tpu_custom_call.1} parent=1 // loop_footer_branch
      %14 = sbr.rel target = $region3
    $region8: #{tpu_custom_call.1} parent=1 // loop_exit
      _
    %409 = vsyncpa [#allocation3], 1
    %s410 = scalar_lea.sflag [#allocation3], 1
    %411 = vsyncpa %s410, 1
    %412 = vsyncpa [#allocation6], 1
    %413 = vsyncpa [#allocation4], 1
    %s414 = scalar_lea.sflag [#allocation4], 1
    %415 = vsyncpa %s414, 1

</llo_original>
